<compile_context>
chip_gen: v6e
topology: v6e:2x2x1
jax: 0.10.0
libtpu: 0.0.40
codegen_flags: <defaults>
</compile_context>

<pallas_src>
import jax
import jax.numpy as jnp
from jax import lax
from jax.experimental import pallas as pl
from jax.experimental.pallas import tpu as pltpu

# ----------------------------- config ---------------------------------
SLOT_MAX_NUM = {"user_id": 50, "movie_id": 40}   # insertion order = concat order
DIM = 32
HIDDEN = [16, 8]
BIAS_MAX_NORM = 0.1
VEC_MAX_NORM = 0.1
BATCH = 8

VU = SLOT_MAX_NUM["user_id"]
VM = SLOT_MAX_NUM["movie_id"]
VOCAB_PAD = ((VU + VM + 7) // 8) * 8       # 96, sublane-aligned combined vocab
MOVIE_COL = 64                             # movie block column offset (lane-aligned)
TAB_WIDTH = 128                            # one lane-tile wide combined table

MAX_BATCH_TILE = 256    # rows per grid step when batch is large (MXU-friendly)


# --------------------------- shared math --------------------------------
def _renorm(rows, max_norm):
    # PyTorch nn.Embedding(max_norm=...): renormalize looked-up rows whose L2
    # norm exceeds max_norm (eps = 1e-7).
    # TODO(synk): PyTorch also writes the renormed row back into the table
    # (persistent mutation); a single forward pass is equivalent without it.
    norm = jnp.sqrt(jnp.sum(rows * rows, axis=-1, keepdims=True))
    scale = jnp.where(norm > max_norm, max_norm / (norm + 1e-7), 1.0)
    return rows * scale


# --------------------------- Pallas kernel -----------------------------
def _fm_deep_kernel(idx_ref, tab_ref, w1_ref, w2_ref, small_ref, o_ref):
    TB = idx_ref.shape[0]
    VP = tab_ref.shape[0]
    D = DIM
    H1, H2 = HIDDEN

    # ---- fused embedding gather: one one-hot MXU matmul for both slots ----
    idx = idx_ref[...]                                          # [TB, 2] i32
    iota = lax.broadcasted_iota(jnp.int32, (TB, VP), 1)
    onehot = ((iota == idx[:, 0:1]) |                            # user hot
              (iota == idx[:, 1:2])).astype(jnp.float32)         # movie hot (offset)
    rows = jnp.dot(onehot, tab_ref[...],
                   preferred_element_type=jnp.float32)           # [TB, 128]

    user = _renorm(rows[:, 0:D], VEC_MAX_NORM)                            # [TB, D]
    ubias = _renorm(rows[:, D:D + 1], BIAS_MAX_NORM)                      # [TB, 1]
    group = _renorm(rows[:, MOVIE_COL:MOVIE_COL + D], VEC_MAX_NORM)       # [TB, D]
    mbias = _renorm(rows[:, MOVIE_COL + D:MOVIE_COL + D + 1], BIAS_MAX_NORM)
    sum_bias = ubias + mbias                                              # [TB, 1]

    small = small_ref[...]                                      # [4, 16]
    b1 = small[0:1, :H1]                                        # [1, 16]
    b2 = small[1:2, :H2]                                        # [1, 8]
    w3_row = small[2:3, :H2]                                    # [1, 8]
    b3 = small[3:4, 0:1]                                        # [1, 1]
    b_glob = small[3:4, 1:2]                                    # [1, 1]

    # FM part: sum(user * group, dim=1, keepdim=True)
    fm = jnp.sum(user * group, axis=1, keepdims=True)           # [TB, 1]

    # Deep part: relu(fc1(cat)) without materializing the concat.
    w1 = w1_ref[...]                                            # [2D, H1]
    h = jnp.dot(user, w1[:D, :], preferred_element_type=jnp.float32)
    h = h + jnp.dot(group, w1[D:, :], preferred_element_type=jnp.float32)
    h = jnp.maximum(h + b1, 0.0)                                # [TB, H1]
    h = jnp.dot(h, w2_ref[...], preferred_element_type=jnp.float32)
    h = jnp.maximum(h + b2, 0.0)                                # [TB, H2]
    # fc3 (H2 -> 1) on the VPU/XLU instead of an MXU round trip.
    deep = jnp.maximum(jnp.sum(h * w3_row, axis=1, keepdims=True) + b3, 0.0)

    # y = sigmoid(sum_bias + b + fm + deep_fm)
    z = sum_bias + b_glob + fm + deep
    o_ref[...] = pl.reciprocal(1.0 + jnp.exp(-z), approx=True)


# ------------------------------ wrapper ---------------------------------
def fm_model_forward_pallas(packed, user_idx, movie_idx):
    """packed: dict of pre-packed params; *_idx: int32 [B]."""
    tab = packed["tab"]         # [96, 128]  block-diagonal (user | movie)
    w1 = packed["w1"]           # [2D, H1]
    w2 = packed["w2"]           # [H1, H2]
    small = packed["small"]     # [4, H1]    b1 | b2 | w3_row | (b3, b_global)

    B = user_idx.shape[0]
    B8 = ((B + 7) // 8) * 8                        # sublane-aligned batch
    if B8 <= MAX_BATCH_TILE:
        TB = B8
    else:
        TB = MAX_BATCH_TILE
        B8 = ((B + TB - 1) // TB) * TB
    pad = B8 - B

    # movie indices are pre-offset into the combined vocab; padding_idx = 0 so
    # padded rows gather the zero row and are sliced away from the output.
    idx = jnp.stack([user_idx.astype(jnp.int32),
                     movie_idx.astype(jnp.int32) + VU], axis=1)   # [B, 2]
    idx = jnp.pad(idx, ((0, pad), (0, 0)))                        # [B8, 2]

    def pinned(a):
        return pl.BlockSpec(a.shape, lambda i: (0, 0))

    out = pl.pallas_call(
        _fm_deep_kernel,
        out_shape=jax.ShapeDtypeStruct((B8, 1), jnp.float32),
        grid=(B8 // TB,),
        in_specs=[pl.BlockSpec((TB, 2), lambda i: (i, 0)),
                  pinned(tab), pinned(w1), pinned(w2), pinned(small)],
        out_specs=pl.BlockSpec((TB, 1), lambda i: (i, 0)),
        compiler_params=pltpu.CompilerParams(
            dimension_semantics=("parallel",)),
    )(idx, tab, w1, w2, small)
    return out[:B]


# ------------------------------ params ----------------------------------
def init_params(key):
    raw = {"embedding_v": {}, "embedding_b": {}, "b": jnp.zeros((1,), jnp.float32)}
    n_slots = len(SLOT_MAX_NUM)
    for slot, max_num in SLOT_MAX_NUM.items():
        key, kv, kb = jax.random.split(key, 3)
        ev = jax.random.normal(kv, (max_num, DIM), jnp.float32)
        eb = jax.random.normal(kb, (max_num, 1), jnp.float32)
        # padding_idx=0 -> row 0 is zero
        ev = ev.at[0].set(0.0)
        eb = eb.at[0].set(0.0)
        raw["embedding_v"][slot] = ev
        raw["embedding_b"][slot] = eb

    def linear_init(key, fan_in, fan_out):
        kw, kb = jax.random.split(key)
        bound = 1.0 / jnp.sqrt(fan_in)
        w = jax.random.uniform(kw, (fan_in, fan_out), jnp.float32, -bound, bound)
        b = jax.random.uniform(kb, (1, fan_out), jnp.float32, -bound, bound)
        return w, b

    key, k1, k2, k3 = jax.random.split(key, 4)
    raw["fc1"] = linear_init(k1, n_slots * DIM, HIDDEN[0])
    raw["fc2"] = linear_init(k2, HIDDEN[0], HIDDEN[1])
    raw["fc3"] = linear_init(k3, HIDDEN[1], 1)

    # ---- one-time packing for the fused kernel (done at init, not per call)
    w1, b1 = raw["fc1"]
    w2, b2 = raw["fc2"]
    w3, b3 = raw["fc3"]

    small = jnp.zeros((4, HIDDEN[0]), jnp.float32)
    small = small.at[0, :HIDDEN[0]].set(b1[0])
    small = small.at[1, :HIDDEN[1]].set(b2[0])
    small = small.at[2, :HIDDEN[1]].set(w3[:, 0])
    small = small.at[3, 0].set(b3[0, 0])
    small = small.at[3, 1].set(raw["b"][0])

    # Combined block-diagonal embedding table: one gather matmul for both slots.
    tab = jnp.zeros((VOCAB_PAD, TAB_WIDTH), jnp.float32)
    tab = tab.at[0:VU, 0:DIM].set(raw["embedding_v"]["user_id"])
    tab = tab.at[0:VU, DIM:DIM + 1].set(raw["embedding_b"]["user_id"])
    tab = tab.at[VU:VU + VM, MOVIE_COL:MOVIE_COL + DIM].set(
        raw["embedding_v"]["movie_id"])
    tab = tab.at[VU:VU + VM, MOVIE_COL + DIM:MOVIE_COL + DIM + 1].set(
        raw["embedding_b"]["movie_id"])

    packed = {"tab": tab, "w1": w1, "w2": w2, "small": small}
    return raw, packed


# ----------------------------- reference --------------------------------
def fm_model_reference(raw, slot_indices):
    """Pure-JAX reference mirroring the PyTorch forward."""
    tf_bias, tf_vec = {}, {}
    for slot in SLOT_MAX_NUM:
        idx = slot_indices[slot]
        tf_bias[slot] = _renorm(jnp.take(raw["embedding_b"][slot], idx, axis=0),
                                BIAS_MAX_NORM)
        tf_vec[slot] = _renorm(jnp.take(raw["embedding_v"][slot], idx, axis=0),
                               VEC_MAX_NORM)
    sum_bias = sum(tf_bias[s] for s in tf_bias) + raw["b"]
    user = tf_vec["user_id"]
    group = tf_vec["movie_id"]
    fm = jnp.sum(user * group, axis=1, keepdims=True)
    cat = jnp.concatenate([tf_vec[s] for s in tf_vec], axis=1)
    w1, b1 = raw["fc1"]
    w2, b2 = raw["fc2"]
    w3, b3 = raw["fc3"]
    h = jax.nn.relu(cat @ w1 + b1)
    h = jax.nn.relu(h @ w2 + b2)
    h = jax.nn.relu(h @ w3 + b3)
    return jax.nn.sigmoid(sum_bias + fm + h)


# ------------------------------ main ------------------------------------
if __name__ == "__main__":
    key = jax.random.PRNGKey(0)
    raw, packed = init_params(key)

    key, ku, km = jax.random.split(key, 3)
    user_idx = jax.random.randint(ku, (BATCH,), 0, SLOT_MAX_NUM["user_id"], jnp.int32)
    movie_idx = jax.random.randint(km, (BATCH,), 0, SLOT_MAX_NUM["movie_id"], jnp.int32)

    fwd = jax.jit(fm_model_forward_pallas)
    y = jax.block_until_ready(fwd(packed, user_idx, movie_idx))

    y_ref = jax.block_until_ready(
        fm_model_reference(raw, {"user_id": user_idx, "movie_id": movie_idx}))

    assert y.shape == (BATCH, 1)
    # approx reciprocal (EUP) in the kernel sigmoid -> relaxed tolerance
    assert jnp.max(jnp.abs(y - y_ref)) < 2e-3, "mismatch vs reference"

    print("KERNEL_OK")
</pallas_src>

<mosaic_0001>
module attributes {stable_mosaic.version = 11 : i64} {
  func.func @_fm_deep_kernel(%arg0: i32, %arg1: memref<8x2xi32, #tpu.memory_space<vmem>>, %arg2: memref<96x128xf32, #tpu.memory_space<vmem>>, %arg3: memref<64x16xf32, #tpu.memory_space<vmem>>, %arg4: memref<16x8xf32, #tpu.memory_space<vmem>>, %arg5: memref<4x16xf32, #tpu.memory_space<vmem>>, %arg6: memref<8x1xf32, #tpu.memory_space<vmem>>) attributes {dimension_semantics = [#tpu.dimension_semantics<parallel>], iteration_bounds = array<i64: 1>, scalar_prefetch = 0 : i64, scratch_operands = 0 : i64, tpu.core_type = #tpu.core_type<tc>, window_params = [{transform_indices = @transform_0, window_bounds = array<i64: 8, 2>}, {pipeline_mode = #tpu.pipeline_mode<synchronous>, transform_indices = @transform_1, window_bounds = array<i64: 96, 128>}, {pipeline_mode = #tpu.pipeline_mode<synchronous>, transform_indices = @transform_2, window_bounds = array<i64: 64, 16>}, {pipeline_mode = #tpu.pipeline_mode<synchronous>, transform_indices = @transform_3, window_bounds = array<i64: 16, 8>}, {pipeline_mode = #tpu.pipeline_mode<synchronous>, transform_indices = @transform_4, window_bounds = array<i64: 4, 16>}, {transform_indices = @transform_5, window_bounds = array<i64: 8, 1>}]} {
    %c0 = arith.constant 0 : index
    %c0_0 = arith.constant 0 : index
    %0 = vector.load %arg1[%c0, %c0_0] : memref<8x2xi32, #tpu.memory_space<vmem>>, vector<8x2xi32>
    %1 = tpu.iota {dimensions = array<i32: 1>} : vector<8x96xi32>
    %2 = vector.extract_strided_slice %0 {offsets = [0, 0], sizes = [8, 1], strides = [1, 1]} : vector<8x2xi32> to vector<8x1xi32>
    %3 = vector.broadcast %2 : vector<8x1xi32> to vector<8x96xi32>
    %4 = arith.cmpi eq, %1, %3 : vector<8x96xi32>
    %5 = vector.extract_strided_slice %0 {offsets = [0, 1], sizes = [8, 1], strides = [1, 1]} : vector<8x2xi32> to vector<8x1xi32>
    %6 = vector.broadcast %5 : vector<8x1xi32> to vector<8x96xi32>
    %7 = arith.cmpi eq, %1, %6 : vector<8x96xi32>
    %8 = arith.ori %4, %7 : vector<8x96xi1>
    %9 = arith.extui %8 : vector<8x96xi1> to vector<8x96xi32>
    %10 = arith.sitofp %9 : vector<8x96xi32> to vector<8x96xf32>
    %c0_1 = arith.constant 0 : index
    %c0_2 = arith.constant 0 : index
    %11 = vector.load %arg2[%c0_1, %c0_2] : memref<96x128xf32, #tpu.memory_space<vmem>>, vector<96x128xf32>
    %cst = arith.constant dense<0.000000e+00> : vector<8x128xf32>
    %12 = tpu.matmul %10, %11, %cst {dimension_numbers = #tpu.dot_dimension_numbers<[1], [0], [0], [1], [0, 0, 1, 1], [], []>} : vector<8x96xf32>, vector<96x128xf32>, vector<8x128xf32> -> vector<8x128xf32>
    %13 = vector.extract_strided_slice %12 {offsets = [0, 0], sizes = [8, 32], strides = [1, 1]} : vector<8x128xf32> to vector<8x32xf32>
    %14 = arith.mulf %13, %13 : vector<8x32xf32>
    %cst_3 = arith.constant dense<0.000000e+00> : vector<8xf32>
    %15 = vector.multi_reduction <add>, %14, %cst_3 [1] : vector<8x32xf32> to vector<8xf32>
    %16 = vector.shape_cast %15 : vector<8xf32> to vector<8x1xf32>
    %17 = math.sqrt %16 : vector<8x1xf32>
    %cst_4 = arith.constant 1.000000e-01 : f32
    %18 = vector.broadcast %cst_4 : f32 to vector<8x1xf32>
    %19 = arith.cmpf ogt, %17, %18 : vector<8x1xf32>
    %cst_5 = arith.constant 1.000000e-07 : f32
    %20 = vector.broadcast %cst_5 : f32 to vector<8x1xf32>
    %21 = arith.addf %17, %20 : vector<8x1xf32>
    %cst_6 = arith.constant 1.000000e-01 : f32
    %22 = vector.broadcast %cst_6 : f32 to vector<8x1xf32>
    %23 = arith.divf %22, %21 : vector<8x1xf32>
    %cst_7 = arith.constant 1.000000e+00 : f32
    %24 = vector.broadcast %cst_7 : f32 to vector<8x1xf32>
    %25 = arith.select %19, %23, %24 : vector<8x1xi1>, vector<8x1xf32>
    %26 = vector.broadcast %25 : vector<8x1xf32> to vector<8x32xf32>
    %27 = arith.mulf %13, %26 : vector<8x32xf32>
    %28 = vector.extract_strided_slice %12 {offsets = [0, 32], sizes = [8, 1], strides = [1, 1]} : vector<8x128xf32> to vector<8x1xf32>
    %29 = arith.mulf %28, %28 : vector<8x1xf32>
    %cst_8 = arith.constant dense<0.000000e+00> : vector<8xf32>
    %30 = vector.multi_reduction <add>, %29, %cst_8 [1] : vector<8x1xf32> to vector<8xf32>
    %31 = vector.shape_cast %30 : vector<8xf32> to vector<8x1xf32>
    %32 = math.sqrt %31 : vector<8x1xf32>
    %cst_9 = arith.constant 1.000000e-01 : f32
    %33 = vector.broadcast %cst_9 : f32 to vector<8x1xf32>
    %34 = arith.cmpf ogt, %32, %33 : vector<8x1xf32>
    %cst_10 = arith.constant 1.000000e-07 : f32
    %35 = vector.broadcast %cst_10 : f32 to vector<8x1xf32>
    %36 = arith.addf %32, %35 : vector<8x1xf32>
    %cst_11 = arith.constant 1.000000e-01 : f32
    %37 = vector.broadcast %cst_11 : f32 to vector<8x1xf32>
    %38 = arith.divf %37, %36 : vector<8x1xf32>
    %cst_12 = arith.constant 1.000000e+00 : f32
    %39 = vector.broadcast %cst_12 : f32 to vector<8x1xf32>
    %40 = arith.select %34, %38, %39 : vector<8x1xi1>, vector<8x1xf32>
    %41 = arith.mulf %28, %40 : vector<8x1xf32>
    %42 = vector.extract_strided_slice %12 {offsets = [0, 64], sizes = [8, 32], strides = [1, 1]} : vector<8x128xf32> to vector<8x32xf32>
    %43 = arith.mulf %42, %42 : vector<8x32xf32>
    %cst_13 = arith.constant dense<0.000000e+00> : vector<8xf32>
    %44 = vector.multi_reduction <add>, %43, %cst_13 [1] : vector<8x32xf32> to vector<8xf32>
    %45 = vector.shape_cast %44 : vector<8xf32> to vector<8x1xf32>
    %46 = math.sqrt %45 : vector<8x1xf32>
    %cst_14 = arith.constant 1.000000e-01 : f32
    %47 = vector.broadcast %cst_14 : f32 to vector<8x1xf32>
    %48 = arith.cmpf ogt, %46, %47 : vector<8x1xf32>
    %cst_15 = arith.constant 1.000000e-07 : f32
    %49 = vector.broadcast %cst_15 : f32 to vector<8x1xf32>
    %50 = arith.addf %46, %49 : vector<8x1xf32>
    %cst_16 = arith.constant 1.000000e-01 : f32
    %51 = vector.broadcast %cst_16 : f32 to vector<8x1xf32>
    %52 = arith.divf %51, %50 : vector<8x1xf32>
    %cst_17 = arith.constant 1.000000e+00 : f32
    %53 = vector.broadcast %cst_17 : f32 to vector<8x1xf32>
    %54 = arith.select %48, %52, %53 : vector<8x1xi1>, vector<8x1xf32>
    %55 = vector.broadcast %54 : vector<8x1xf32> to vector<8x32xf32>
    %56 = arith.mulf %42, %55 : vector<8x32xf32>
    %57 = vector.extract_strided_slice %12 {offsets = [0, 96], sizes = [8, 1], strides = [1, 1]} : vector<8x128xf32> to vector<8x1xf32>
    %58 = arith.mulf %57, %57 : vector<8x1xf32>
    %cst_18 = arith.constant dense<0.000000e+00> : vector<8xf32>
    %59 = vector.multi_reduction <add>, %58, %cst_18 [1] : vector<8x1xf32> to vector<8xf32>
    %60 = vector.shape_cast %59 : vector<8xf32> to vector<8x1xf32>
    %61 = math.sqrt %60 : vector<8x1xf32>
    %cst_19 = arith.constant 1.000000e-01 : f32
    %62 = vector.broadcast %cst_19 : f32 to vector<8x1xf32>
    %63 = arith.cmpf ogt, %61, %62 : vector<8x1xf32>
    %cst_20 = arith.constant 1.000000e-07 : f32
    %64 = vector.broadcast %cst_20 : f32 to vector<8x1xf32>
    %65 = arith.addf %61, %64 : vector<8x1xf32>
    %cst_21 = arith.constant 1.000000e-01 : f32
    %66 = vector.broadcast %cst_21 : f32 to vector<8x1xf32>
    %67 = arith.divf %66, %65 : vector<8x1xf32>
    %cst_22 = arith.constant 1.000000e+00 : f32
    %68 = vector.broadcast %cst_22 : f32 to vector<8x1xf32>
    %69 = arith.select %63, %67, %68 : vector<8x1xi1>, vector<8x1xf32>
    %70 = arith.mulf %57, %69 : vector<8x1xf32>
    %71 = arith.addf %41, %70 : vector<8x1xf32>
    %c0_23 = arith.constant 0 : index
    %c0_24 = arith.constant 0 : index
    %72 = vector.load %arg5[%c0_23, %c0_24] : memref<4x16xf32, #tpu.memory_space<vmem>>, vector<4x16xf32>
    %73 = vector.extract_strided_slice %72 {offsets = [0, 0], sizes = [1, 16], strides = [1, 1]} : vector<4x16xf32> to vector<1x16xf32>
    %74 = vector.extract_strided_slice %72 {offsets = [1, 0], sizes = [1, 8], strides = [1, 1]} : vector<4x16xf32> to vector<1x8xf32>
    %75 = vector.extract_strided_slice %72 {offsets = [2, 0], sizes = [1, 8], strides = [1, 1]} : vector<4x16xf32> to vector<1x8xf32>
    %76 = vector.extract_strided_slice %72 {offsets = [3, 0], sizes = [1, 1], strides = [1, 1]} : vector<4x16xf32> to vector<1x1xf32>
    %77 = vector.extract_strided_slice %72 {offsets = [3, 1], sizes = [1, 1], strides = [1, 1]} : vector<4x16xf32> to vector<1x1xf32>
    %78 = arith.mulf %27, %56 : vector<8x32xf32>
    %cst_25 = arith.constant dense<0.000000e+00> : vector<8xf32>
    %79 = vector.multi_reduction <add>, %78, %cst_25 [1] : vector<8x32xf32> to vector<8xf32>
    %80 = vector.shape_cast %79 : vector<8xf32> to vector<8x1xf32>
    %c0_26 = arith.constant 0 : index
    %c0_27 = arith.constant 0 : index
    %81 = vector.load %arg3[%c0_26, %c0_27] : memref<64x16xf32, #tpu.memory_space<vmem>>, vector<64x16xf32>
    %82 = vector.extract_strided_slice %81 {offsets = [0, 0], sizes = [32, 16], strides = [1, 1]} : vector<64x16xf32> to vector<32x16xf32>
    %cst_28 = arith.constant dense<0.000000e+00> : vector<8x16xf32>
    %83 = tpu.matmul %27, %82, %cst_28 {dimension_numbers = #tpu.dot_dimension_numbers<[1], [0], [0], [1], [0, 0, 1, 1], [], []>} : vector<8x32xf32>, vector<32x16xf32>, vector<8x16xf32> -> vector<8x16xf32>
    %84 = vector.extract_strided_slice %81 {offsets = [32, 0], sizes = [32, 16], strides = [1, 1]} : vector<64x16xf32> to vector<32x16xf32>
    %cst_29 = arith.constant dense<0.000000e+00> : vector<8x16xf32>
    %85 = tpu.matmul %56, %84, %cst_29 {dimension_numbers = #tpu.dot_dimension_numbers<[1], [0], [0], [1], [0, 0, 1, 1], [], []>} : vector<8x32xf32>, vector<32x16xf32>, vector<8x16xf32> -> vector<8x16xf32>
    %86 = arith.addf %83, %85 : vector<8x16xf32>
    %87 = vector.broadcast %73 : vector<1x16xf32> to vector<8x16xf32>
    %88 = arith.addf %86, %87 : vector<8x16xf32>
    %cst_30 = arith.constant 0.000000e+00 : f32
    %89 = vector.broadcast %cst_30 : f32 to vector<8x16xf32>
    %90 = arith.maximumf %88, %89 : vector<8x16xf32>
    %c0_31 = arith.constant 0 : index
    %c0_32 = arith.constant 0 : index
    %91 = vector.load %arg4[%c0_31, %c0_32] : memref<16x8xf32, #tpu.memory_space<vmem>>, vector<16x8xf32>
    %cst_33 = arith.constant dense<0.000000e+00> : vector<8x8xf32>
    %92 = tpu.matmul %90, %91, %cst_33 {dimension_numbers = #tpu.dot_dimension_numbers<[1], [0], [0], [1], [0, 0, 1, 1], [], []>} : vector<8x16xf32>, vector<16x8xf32>, vector<8x8xf32> -> vector<8x8xf32>
    %93 = vector.broadcast %74 : vector<1x8xf32> to vector<8x8xf32>
    %94 = arith.addf %92, %93 : vector<8x8xf32>
    %cst_34 = arith.constant 0.000000e+00 : f32
    %95 = vector.broadcast %cst_34 : f32 to vector<8x8xf32>
    %96 = arith.maximumf %94, %95 : vector<8x8xf32>
    %97 = vector.broadcast %75 : vector<1x8xf32> to vector<8x8xf32>
    %98 = arith.mulf %96, %97 : vector<8x8xf32>
    %cst_35 = arith.constant dense<0.000000e+00> : vector<8xf32>
    %99 = vector.multi_reduction <add>, %98, %cst_35 [1] : vector<8x8xf32> to vector<8xf32>
    %100 = vector.shape_cast %99 : vector<8xf32> to vector<8x1xf32>
    %101 = vector.broadcast %76 : vector<1x1xf32> to vector<8x1xf32>
    %102 = arith.addf %100, %101 : vector<8x1xf32>
    %cst_36 = arith.constant 0.000000e+00 : f32
    %103 = vector.broadcast %cst_36 : f32 to vector<8x1xf32>
    %104 = arith.maximumf %102, %103 : vector<8x1xf32>
    %105 = vector.broadcast %77 : vector<1x1xf32> to vector<8x1xf32>
    %106 = arith.addf %71, %105 : vector<8x1xf32>
    %107 = arith.addf %106, %80 : vector<8x1xf32>
    %108 = arith.addf %107, %104 : vector<8x1xf32>
    %cst_37 = arith.constant 0.000000e+00 : f32
    %109 = vector.broadcast %cst_37 : f32 to vector<8x1xf32>
    %110 = arith.subf %109, %108 : vector<8x1xf32>
    %111 = math.exp %110 : vector<8x1xf32>
    %cst_38 = arith.constant 1.000000e+00 : f32
    %112 = vector.broadcast %cst_38 : f32 to vector<8x1xf32>
    %113 = arith.addf %112, %111 : vector<8x1xf32>
    %114 = tpu.reciprocal %113 {approx = true} : vector<8x1xf32> -> vector<8x1xf32>
    %c0_39 = arith.constant 0 : index
    %c0_40 = arith.constant 0 : index
    %115 = vector.load %arg6[%c0_39, %c0_40] : memref<8x1xf32, #tpu.memory_space<vmem>>, vector<8x1xf32>
    tpu.vector_store %arg6[%c0_39, %c0_40], %114 {strides = array<i32>} : memref<8x1xf32, #tpu.memory_space<vmem>>, vector<8x1xf32>,
    return
  }
  func.func @transform_0(%arg0: i32) -> (i32, i32) {
    %c0_i32 = arith.constant 0 : i32
    %c0_i32_0 = arith.constant 0 : i32
    return %arg0, %c0_i32 : i32, i32
  }
  func.func @transform_1(%arg0: i32) -> (i32, i32) {
    %c0_i32 = arith.constant 0 : i32
    %c0_i32_0 = arith.constant 0 : i32
    %c0_i32_1 = arith.constant 0 : i32
    return %c0_i32, %c0_i32_0 : i32, i32
  }
  func.func @transform_2(%arg0: i32) -> (i32, i32) {
    %c0_i32 = arith.constant 0 : i32
    %c0_i32_0 = arith.constant 0 : i32
    %c0_i32_1 = arith.constant 0 : i32
    return %c0_i32, %c0_i32_0 : i32, i32
  }
  func.func @transform_3(%arg0: i32) -> (i32, i32) {
    %c0_i32 = arith.constant 0 : i32
    %c0_i32_0 = arith.constant 0 : i32
    %c0_i32_1 = arith.constant 0 : i32
    return %c0_i32, %c0_i32_0 : i32, i32
  }
  func.func @transform_4(%arg0: i32) -> (i32, i32) {
    %c0_i32 = arith.constant 0 : i32
    %c0_i32_0 = arith.constant 0 : i32
    %c0_i32_1 = arith.constant 0 : i32
    return %c0_i32, %c0_i32_0 : i32, i32
  }
  func.func @transform_5(%arg0: i32) -> (i32, i32) {
    %c0_i32 = arith.constant 0 : i32
    %c0_i32_0 = arith.constant 0 : i32
    return %arg0, %c0_i32 : i32, i32
  }
}

</mosaic_0001>

<llo_original>
// kernel: fm_model_forward_pallas.1
$region0: #{fm_model_forward_pallas.1}
  #allocation0 [shape = 'u32[]', space=smem, size = 0x4, offset = 0x4, fixed_abs, tag = 'smem constant byte address 0x4 - core index']
  #allocation1 [shape = 'u32[144,128]{1,0:T(1,128)}', space=vmem, size = 0x12000, scoped, tag = 'internal scratch']
  %s0 = inlined_call_operand.vmem [shape: s32[8,2], index: 0, kind: input, shape index: {}]
  %s1 = inlined_call_operand.vmem [shape: f32[96,128], index: 1, kind: input, shape index: {}]
  %s2 = inlined_call_operand.vmem [shape: f32[64,16], index: 2, kind: input, shape index: {}]
  %s3 = inlined_call_operand.vmem [shape: f32[16,8], index: 3, kind: input, shape index: {}]
  %s4 = inlined_call_operand.vmem [shape: f32[4,16], index: 4, kind: input, shape index: {}]
  %s5 = inlined_call_operand.vmem [shape: f32[8,1], index: 5, kind: output, shape index: {}]
  %s6 = sld [smem:[#allocation0]]
  $region30: #{fm_model_forward_pallas.1} parent=0
    _
  %s8 = ssub.s32 1, %s6
  %s9 = scalar_select 0, %s8, %s6
  // Predicated region
  $region2: #{fm_model_forward_pallas.1} parent=0 // pred_check
    _
  $region3: #{fm_model_forward_pallas.1} parent=0 // pred_check_branch
    %11 = sbr.rel (0) target = $region5
  $region4: #{fm_model_forward_pallas.1} parent=0 // pred_region
    _
  $region5: #{fm_model_forward_pallas.1} parent=0 // pred_fallthru
    _
  // Predicated region
  $region6: #{fm_model_forward_pallas.1} parent=0 // pred_check
    _
  $region7: #{fm_model_forward_pallas.1} parent=0 // pred_check_branch
    %13 = sbr.rel (0) target = $region9
  $region8: #{fm_model_forward_pallas.1} parent=0 // pred_region
    _
  $region9: #{fm_model_forward_pallas.1} parent=0 // pred_fallthru
    _
  // Predicated region
  $region10: #{fm_model_forward_pallas.1} parent=0 // pred_check
    _
  $region11: #{fm_model_forward_pallas.1} parent=0 // pred_check_branch
    %15 = sbr.rel (0) target = $region13
  $region12: #{fm_model_forward_pallas.1} parent=0 // pred_region
    _
  $region13: #{fm_model_forward_pallas.1} parent=0 // pred_fallthru
    _
  // Predicated region
  $region14: #{fm_model_forward_pallas.1} parent=0 // pred_check
    _
  $region15: #{fm_model_forward_pallas.1} parent=0 // pred_check_branch
    %17 = sbr.rel (0) target = $region17
  $region16: #{fm_model_forward_pallas.1} parent=0 // pred_region
    _
  $region17: #{fm_model_forward_pallas.1} parent=0 // pred_fallthru
    _
  // Predicated region
  $region18: #{fm_model_forward_pallas.1} parent=0 // pred_check
    _
  $region19: #{fm_model_forward_pallas.1} parent=0 // pred_check_branch
    %19 = sbr.rel (0) target = $region21
  $region20: #{fm_model_forward_pallas.1} parent=0 // pred_region
    _
  $region21: #{fm_model_forward_pallas.1} parent=0 // pred_fallthru
    _
  %v20 = vld [vmem:[%s0] sm:$0xff]
  %v21 = vlaneseq
  %v22 = vand.u32 %v21, 127
  %23 = vset.pattern.permute.xlu0 0
  %24 = vperm.xlu0 %23, %v20
  %v25 = vpop.permute.xlu0 %24
  %vm26 = vcmp.eq.s32.totalorder %v22, %v25
  %27 = vset.pattern.permute.xlu0 1
  %28 = vperm.xlu0 %27, %v20
  %v29 = vpop.permute.xlu0 %28
  %vm30 = vcmp.eq.s32.totalorder %v22, %v29
  %vm31 = vmor %vm26, %vm30
  %v32 = vsel %vm31, 1, 0
  %v33 = vcvt.s32.f32 %v32
  %v34 = vld [vmem:[%s1] sm:$0xff]
  %v35 = vld [vmem:[%s1 + $0x8] sm:$0xff]
  %v36 = vld [vmem:[%s1 + $0x10] sm:$0xff]
  %v37 = vld [vmem:[%s1 + $0x18] sm:$0xff]
  %v38 = vld [vmem:[%s1 + $0x20] sm:$0xff]
  %v39 = vld [vmem:[%s1 + $0x28] sm:$0xff]
  %v40 = vld [vmem:[%s1 + $0x30] sm:$0xff]
  %v41 = vld [vmem:[%s1 + $0x38] sm:$0xff]
  %v42 = vld [vmem:[%s1 + $0x40] sm:$0xff]
  %v43 = vld [vmem:[%s1 + $0x48] sm:$0xff]
  %v44 = vld [vmem:[%s1 + $0x50] sm:$0xff]
  %v45 = vld [vmem:[%s1 + $0x58] sm:$0xff]
  %vm46 = vcmask 785408
  %v48 = vsel %vm46, %v33, 0
  %50 = vmatprep.subr.mxu0 0.0
  %51 = vmatpush1.msra.mxu0 0.0
  %52 = vmatprep.subr.mxu0 0.0
  %53 = vmatpush1.msra.mxu0 0.0
  %54 = vmatprep.subr.mxu0 0.0
  %55 = vmatpush1.msra.mxu0 0.0
  %56 = vmatprep.subr.mxu0 0.0
  %57 = vmatpush1.msra.mxu0 0.0
  %58 = vmatprep.subr.mxu0 0.0
  %59 = vmatpush1.msra.mxu0 %v45
  %60 = vmatprep.subr.mxu0 0.0
  %61 = vmatpush1.msra.mxu0 %v44
  %62 = vmatprep.subr.mxu0 0.0
  %63 = vmatpush1.msra.mxu0 %v43
  %64 = vmatprep.subr.mxu0 0.0
  %65 = vmatpush1.msra.mxu0 %v42
  %66 = vmatprep.subr.mxu0 0.0
  %67 = vmatpush1.msra.mxu0 %v41
  %68 = vmatprep.subr.mxu0 0.0
  %69 = vmatpush1.msra.mxu0 %v40
  %70 = vmatprep.subr.mxu0 0.0
  %71 = vmatpush1.msra.mxu0 %v39
  %72 = vmatprep.subr.mxu0 0.0
  %73 = vmatpush1.msra.mxu0 %v38
  %74 = vmatprep.subr.mxu0 0.0
  %75 = vmatpush1.msra.mxu0 %v37
  %76 = vmatprep.subr.mxu0 0.0
  %77 = vmatpush1.msra.mxu0 %v36
  %78 = vmatprep.subr.mxu0 0.0
  %79 = vmatpush1.msra.mxu0 %v35
  %80 = vmatprep.subr.mxu0 0.0
  %81 = vmatpush1.msra.mxu0 %v34
  %82 = vmatprep.subr.mxu0 0.0
  %83 = vmatpush2.msra.mxu0 0.0
  %84 = vmatprep.subr.mxu0 0.0
  %85 = vmatpush2.msra.mxu0 0.0
  %86 = vmatprep.subr.mxu0 0.0
  %87 = vmatpush2.msra.mxu0 0.0
  %88 = vmatprep.subr.mxu0 0.0
  %89 = vmatpush2.msra.mxu0 0.0
  %90 = vmatprep.subr.mxu0 0.0
  %91 = vmatpush2.msra.mxu0 0.0
  %92 = vmatprep.subr.mxu0 0.0
  %93 = vmatpush2.msra.mxu0 0.0
  %94 = vmatprep.subr.mxu0 0.0
  %95 = vmatpush2.msra.mxu0 0.0
  %96 = vmatprep.subr.mxu0 0.0
  %97 = vmatpush2.msra.mxu0 0.0
  %98 = vmatprep.subr.mxu0 0.0
  %99 = vmatpush2.msra.mxu0 0.0
  %100 = vmatprep.subr.mxu0 0.0
  %101 = vmatpush2.msra.mxu0 0.0
  %102 = vmatprep.subr.mxu0 0.0
  %103 = vmatpush2.msra.mxu0 0.0
  %104 = vmatprep.subr.mxu0 0.0
  %105 = vmatpush2.msra.mxu0 0.0
  %106 = vmatprep.subr.mxu0 0.0
  %107 = vmatpush2.msra.mxu0 0.0
  %108 = vmatprep.subr.mxu0 0.0
  %109 = vmatpush2.msra.mxu0 0.0
  %110 = vmatprep.subr.mxu0 0.0
  %111 = vmatpush2.msra.mxu0 0.0
  %112 = vmatprep.subr.mxu0 0.0
  %113 = vmatpush2.msra.mxu0 0.0
  %114 = vmatprep.mubr.f32.mxu0 0.0
  %115 = vmatmul.mubr.f32.gmra.mxu0 %v48
  %v116 = vpop.f32.mrf.mxu0
  %v117 = vadd.f32 0.0, %v116
  %v118 = vpop.f32.mrf.mxu0
  %119 = vdwg.mxu0
  %v120 = vmul.f32 %v117, %v117
  %vm121 = vcmask 261120
  %v122 = vsel %vm121, %v120, 0.0
  %123 = vadd.xlane.f32.xlu0 %v122
  %v124 = vpop.xlane.xlu0 %123
  %v125 = vrsqrt.pop %v124
  %v126 = vmul.f32 %v124, %v125
  %vm127 = vcmp.eq.f32.partialorder %v124, inf
  %v128 = vsel %vm127, %v124, %v126
  %vm129 = vcmp.eq.f32.partialorder %v124, 0.0
  %v130 = vand.u32 %v124, 2147483648
  %v131 = vsel %vm129, %v130, %v128
  %vm132 = vcmp.gt.f32.partialorder %v131, 0.1
  %v133 = vadd.f32 %v131, 1e-07
  %v134 = vrcp.pop %v133
  %v135 = vmul.f32 0.1, %v134
  %v136 = vsel %vm132, %v135, 1.0
  %v137 = vmul.f32 %v117, %v136
  %v138 = vadd.f32 %v120, 0.0
  %v139 = vrsqrt.pop %v138
  %v140 = vmul.f32 %v138, %v139
  %vm141 = vcmp.eq.f32.partialorder %v138, inf
  %v142 = vsel %vm141, %v138, %v140
  %vm143 = vcmp.eq.f32.partialorder %v138, 0.0
  %v144 = vand.u32 %v138, 2147483648
  %v145 = vsel %vm143, %v144, %v142
  %vm146 = vcmp.gt.f32.partialorder %v145, 0.1
  %v147 = vadd.f32 %v145, 1e-07
  %v148 = vrcp.pop %v147
  %v149 = vmul.f32 0.1, %v148
  %v150 = vsel %vm146, %v149, 1.0
  %v151 = vmul.f32 %v117, %v150
  %153 = vrot.lane.b32.xlu0 %v120, 64
  %v154 = vpop.permute.xlu0 %153
  %v156 = vsel %vm121, %v154, 0.0
  %157 = vadd.xlane.f32.xlu0 %v156
  %v158 = vpop.xlane.xlu0 %157
  %v159 = vrsqrt.pop %v158
  %v160 = vmul.f32 %v158, %v159
  %vm161 = vcmp.eq.f32.partialorder %v158, inf
  %v162 = vsel %vm161, %v158, %v160
  %vm163 = vcmp.eq.f32.partialorder %v158, 0.0
  %v164 = vand.u32 %v158, 2147483648
  %v165 = vsel %vm163, %v164, %v162
  %vm166 = vcmp.gt.f32.partialorder %v165, 0.1
  %v167 = vadd.f32 %v165, 1e-07
  %v168 = vrcp.pop %v167
  %v169 = vmul.f32 0.1, %v168
  %v170 = vsel %vm166, %v169, 1.0
  %v171 = vmul.f32 %v117, %v170
  %173 = vrot.lane.b32.xlu0 %v151, 64
  %v174 = vpop.permute.xlu0 %173
  %v176 = vadd.f32 %v151, %v174
  %v177 = vld [vmem:[%s4] sm:$0xf]
  %179 = vrot.lane.b32.xlu0 %v171, 64
  %v180 = vpop.permute.xlu0 %179
  %v182 = vmul.f32 %v137, %v180
  %v183 = vsel %vm121, %v182, 0.0
  %184 = vadd.xlane.f32.xlu0 %v183
  %v185 = vpop.xlane.xlu0 %184
  %v186 = vld [vmem:[%s2] sm:$0xff]
  %v187 = vld [vmem:[%s2 + $0x8] sm:$0xff]
  %v188 = vld [vmem:[%s2 + $0x10] sm:$0xff]
  %v189 = vld [vmem:[%s2 + $0x18] sm:$0xff]
  %v190 = vld [vmem:[%s2 + $0x20] sm:$0xff]
  %v191 = vld [vmem:[%s2 + $0x28] sm:$0xff]
  %v192 = vld [vmem:[%s2 + $0x30] sm:$0xff]
  %v193 = vld [vmem:[%s2 + $0x38] sm:$0xff]
  %v194 = vsel %vm121, %v180, 0
  %196 = vmatprep.subr.mxu0 0.0
  %197 = vmatpush1.msra.mxu0 0.0
  %198 = vmatprep.subr.mxu0 0.0
  %199 = vmatpush1.msra.mxu0 0.0
  %200 = vmatprep.subr.mxu0 0.0
  %201 = vmatpush1.msra.mxu0 0.0
  %202 = vmatprep.subr.mxu0 0.0
  %203 = vmatpush1.msra.mxu0 0.0
  %204 = vmatprep.subr.mxu0 0.0
  %205 = vmatpush1.msra.mxu0 0.0
  %206 = vmatprep.subr.mxu0 0.0
  %207 = vmatpush1.msra.mxu0 0.0
  %208 = vmatprep.subr.mxu0 0.0
  %209 = vmatpush1.msra.mxu0 0.0
  %210 = vmatprep.subr.mxu0 0.0
  %211 = vmatpush1.msra.mxu0 0.0
  %212 = vmatprep.subr.mxu0 0.0
  %213 = vmatpush1.msra.mxu0 0.0
  %214 = vmatprep.subr.mxu0 0.0
  %215 = vmatpush1.msra.mxu0 0.0
  %216 = vmatprep.subr.mxu0 0.0
  %217 = vmatpush1.msra.mxu0 0.0
  %218 = vmatprep.subr.mxu0 0.0
  %219 = vmatpush1.msra.mxu0 0.0
  %220 = vmatprep.subr.mxu0 0.0
  %221 = vmatpush1.msra.mxu0 %v193
  %222 = vmatprep.subr.mxu0 0.0
  %223 = vmatpush1.msra.mxu0 %v192
  %224 = vmatprep.subr.mxu0 0.0
  %225 = vmatpush1.msra.mxu0 %v191
  %226 = vmatprep.subr.mxu0 0.0
  %227 = vmatpush1.msra.mxu0 %v190
  %228 = vmatprep.subr.mxu0 0.0
  %229 = vmatpush2.msra.mxu0 0.0
  %230 = vmatprep.subr.mxu0 0.0
  %231 = vmatpush2.msra.mxu0 0.0
  %232 = vmatprep.subr.mxu0 0.0
  %233 = vmatpush2.msra.mxu0 0.0
  %234 = vmatprep.subr.mxu0 0.0
  %235 = vmatpush2.msra.mxu0 0.0
  %236 = vmatprep.subr.mxu0 0.0
  %237 = vmatpush2.msra.mxu0 0.0
  %238 = vmatprep.subr.mxu0 0.0
  %239 = vmatpush2.msra.mxu0 0.0
  %240 = vmatprep.subr.mxu0 0.0
  %241 = vmatpush2.msra.mxu0 0.0
  %242 = vmatprep.subr.mxu0 0.0
  %243 = vmatpush2.msra.mxu0 0.0
  %244 = vmatprep.subr.mxu0 0.0
  %245 = vmatpush2.msra.mxu0 0.0
  %246 = vmatprep.subr.mxu0 0.0
  %247 = vmatpush2.msra.mxu0 0.0
  %248 = vmatprep.subr.mxu0 0.0
  %249 = vmatpush2.msra.mxu0 0.0
  %250 = vmatprep.subr.mxu0 0.0
  %251 = vmatpush2.msra.mxu0 0.0
  %252 = vmatprep.subr.mxu0 0.0
  %253 = vmatpush2.msra.mxu0 0.0
  %254 = vmatprep.subr.mxu0 0.0
  %255 = vmatpush2.msra.mxu0 0.0
  %256 = vmatprep.subr.mxu0 0.0
  %257 = vmatpush2.msra.mxu0 0.0
  %258 = vmatprep.subr.mxu0 0.0
  %259 = vmatpush2.msra.mxu0 0.0
  %260 = vmatprep.mubr.f32.mxu0 0.0
  %261 = vmatmul.mubr.f32.gmra.mxu0 %v194
  %v262 = vpop.f32.mrf.mxu0
  %v263 = vadd.f32 0.0, %v262
  %v264 = vpop.f32.mrf.mxu0
  %265 = vdwg.mxu0
  %v267 = vsel %vm121, %v137, 0
  %269 = vmatprep.subr.mxu0 0.0
  %270 = vmatpush1.msra.mxu0 0.0
  %271 = vmatprep.subr.mxu0 0.0
  %272 = vmatpush1.msra.mxu0 0.0
  %273 = vmatprep.subr.mxu0 0.0
  %274 = vmatpush1.msra.mxu0 0.0
  %275 = vmatprep.subr.mxu0 0.0
  %276 = vmatpush1.msra.mxu0 0.0
  %277 = vmatprep.subr.mxu0 0.0
  %278 = vmatpush1.msra.mxu0 0.0
  %279 = vmatprep.subr.mxu0 0.0
  %280 = vmatpush1.msra.mxu0 0.0
  %281 = vmatprep.subr.mxu0 0.0
  %282 = vmatpush1.msra.mxu0 0.0
  %283 = vmatprep.subr.mxu0 0.0
  %284 = vmatpush1.msra.mxu0 0.0
  %285 = vmatprep.subr.mxu0 0.0
  %286 = vmatpush1.msra.mxu0 0.0
  %287 = vmatprep.subr.mxu0 0.0
  %288 = vmatpush1.msra.mxu0 0.0
  %289 = vmatprep.subr.mxu0 0.0
  %290 = vmatpush1.msra.mxu0 0.0
  %291 = vmatprep.subr.mxu0 0.0
  %292 = vmatpush1.msra.mxu0 0.0
  %293 = vmatprep.subr.mxu0 0.0
  %294 = vmatpush1.msra.mxu0 %v189
  %295 = vmatprep.subr.mxu0 0.0
  %296 = vmatpush1.msra.mxu0 %v188
  %297 = vmatprep.subr.mxu0 0.0
  %298 = vmatpush1.msra.mxu0 %v187
  %299 = vmatprep.subr.mxu0 0.0
  %300 = vmatpush1.msra.mxu0 %v186
  %301 = vmatprep.subr.mxu0 0.0
  %302 = vmatpush2.msra.mxu0 0.0
  %303 = vmatprep.subr.mxu0 0.0
  %304 = vmatpush2.msra.mxu0 0.0
  %305 = vmatprep.subr.mxu0 0.0
  %306 = vmatpush2.msra.mxu0 0.0
  %307 = vmatprep.subr.mxu0 0.0
  %308 = vmatpush2.msra.mxu0 0.0
  %309 = vmatprep.subr.mxu0 0.0
  %310 = vmatpush2.msra.mxu0 0.0
  %311 = vmatprep.subr.mxu0 0.0
  %312 = vmatpush2.msra.mxu0 0.0
  %313 = vmatprep.subr.mxu0 0.0
  %314 = vmatpush2.msra.mxu0 0.0
  %315 = vmatprep.subr.mxu0 0.0
  %316 = vmatpush2.msra.mxu0 0.0
  %317 = vmatprep.subr.mxu0 0.0
  %318 = vmatpush2.msra.mxu0 0.0
  %319 = vmatprep.subr.mxu0 0.0
  %320 = vmatpush2.msra.mxu0 0.0
  %321 = vmatprep.subr.mxu0 0.0
  %322 = vmatpush2.msra.mxu0 0.0
  %323 = vmatprep.subr.mxu0 0.0
  %324 = vmatpush2.msra.mxu0 0.0
  %325 = vmatprep.subr.mxu0 0.0
  %326 = vmatpush2.msra.mxu0 0.0
  %327 = vmatprep.subr.mxu0 0.0
  %328 = vmatpush2.msra.mxu0 0.0
  %329 = vmatprep.subr.mxu0 0.0
  %330 = vmatpush2.msra.mxu0 0.0
  %331 = vmatprep.subr.mxu0 0.0
  %332 = vmatpush2.msra.mxu0 0.0
  %333 = vmatprep.mubr.f32.mxu0 0.0
  %334 = vmatmul.mubr.f32.gmra.mxu0 %v267
  %v335 = vpop.f32.mrf.mxu0
  %v336 = vadd.f32 %v263, %v335
  %v337 = vpop.f32.mrf.mxu0
  %338 = vdwg.mxu0
  %v339 = vlaneseq
  %v340 = vshrl.u32 %v339, 7
  %v341 = vsub.s32 0, %v340
  %v342 = vrot.slane %v177, %v341
  %v343 = vadd.f32 %v336, %v342
  %v344 = vmax.f32 %v343, 0.0
  %v345 = vld [vmem:[%s3] sm:$0xff]
  %v346 = vld [vmem:[%s3 + $0x8] sm:$0xff]
  %v347 = vlaneseq
  %v348 = vshrl.u32 %v347, 7
  %v349 = vsub.s32 1, %v348
  %v350 = vrot.slane %v177, %v349
  %vm351 = vcmask 130048
  %v353 = vsel %vm351, %v344, 0
  %355 = vmatprep.subr.mxu0 0.0
  %356 = vmatpush1.msra.mxu0 0.0
  %357 = vmatprep.subr.mxu0 0.0
  %358 = vmatpush1.msra.mxu0 0.0
  %359 = vmatprep.subr.mxu0 0.0
  %360 = vmatpush1.msra.mxu0 0.0
  %361 = vmatprep.subr.mxu0 0.0
  %362 = vmatpush1.msra.mxu0 0.0
  %363 = vmatprep.subr.mxu0 0.0
  %364 = vmatpush1.msra.mxu0 0.0
  %365 = vmatprep.subr.mxu0 0.0
  %366 = vmatpush1.msra.mxu0 0.0
  %367 = vmatprep.subr.mxu0 0.0
  %368 = vmatpush1.msra.mxu0 0.0
  %369 = vmatprep.subr.mxu0 0.0
  %370 = vmatpush1.msra.mxu0 0.0
  %371 = vmatprep.subr.mxu0 0.0
  %372 = vmatpush1.msra.mxu0 0.0
  %373 = vmatprep.subr.mxu0 0.0
  %374 = vmatpush1.msra.mxu0 0.0
  %375 = vmatprep.subr.mxu0 0.0
  %376 = vmatpush1.msra.mxu0 0.0
  %377 = vmatprep.subr.mxu0 0.0
  %378 = vmatpush1.msra.mxu0 0.0
  %379 = vmatprep.subr.mxu0 0.0
  %380 = vmatpush1.msra.mxu0 0.0
  %381 = vmatprep.subr.mxu0 0.0
  %382 = vmatpush1.msra.mxu0 0.0
  %383 = vmatprep.subr.mxu0 0.0
  %384 = vmatpush1.msra.mxu0 %v346
  %385 = vmatprep.subr.mxu0 0.0
  %386 = vmatpush1.msra.mxu0 %v345
  %387 = vmatprep.subr.mxu0 0.0
  %388 = vmatpush2.msra.mxu0 0.0
  %389 = vmatprep.subr.mxu0 0.0
  %390 = vmatpush2.msra.mxu0 0.0
  %391 = vmatprep.subr.mxu0 0.0
  %392 = vmatpush2.msra.mxu0 0.0
  %393 = vmatprep.subr.mxu0 0.0
  %394 = vmatpush2.msra.mxu0 0.0
  %395 = vmatprep.subr.mxu0 0.0
  %396 = vmatpush2.msra.mxu0 0.0
  %397 = vmatprep.subr.mxu0 0.0
  %398 = vmatpush2.msra.mxu0 0.0
  %399 = vmatprep.subr.mxu0 0.0
  %400 = vmatpush2.msra.mxu0 0.0
  %401 = vmatprep.subr.mxu0 0.0
  %402 = vmatpush2.msra.mxu0 0.0
  %403 = vmatprep.subr.mxu0 0.0
  %404 = vmatpush2.msra.mxu0 0.0
  %405 = vmatprep.subr.mxu0 0.0
  %406 = vmatpush2.msra.mxu0 0.0
  %407 = vmatprep.subr.mxu0 0.0
  %408 = vmatpush2.msra.mxu0 0.0
  %409 = vmatprep.subr.mxu0 0.0
  %410 = vmatpush2.msra.mxu0 0.0
  %411 = vmatprep.subr.mxu0 0.0
  %412 = vmatpush2.msra.mxu0 0.0
  %413 = vmatprep.subr.mxu0 0.0
  %414 = vmatpush2.msra.mxu0 0.0
  %415 = vmatprep.subr.mxu0 0.0
  %416 = vmatpush2.msra.mxu0 0.0
  %417 = vmatprep.subr.mxu0 0.0
  %418 = vmatpush2.msra.mxu0 0.0
  %419 = vmatprep.mubr.f32.mxu0 0.0
  %420 = vmatmul.mubr.f32.gmra.mxu0 %v353
  %v421 = vpop.f32.mrf.mxu0
  %v422 = vadd.f32 %v350, %v421
  %v423 = vpop.f32.mrf.mxu0
  %424 = vdwg.mxu0
  %v425 = vmax.f32 %v422, 0.0
  %v426 = vlaneseq
  %v427 = vshrl.u32 %v426, 7
  %v428 = vsub.s32 2, %v427
  %v429 = vrot.slane %v177, %v428
  %v430 = vmul.f32 %v425, %v429
  %vm431 = vcmask 64512
  %v432 = vsel %vm431, %v430, 0.0
  %433 = vadd.xlane.f32.xlu0 %v432
  %v434 = vpop.xlane.xlu0 %433
  %v435 = vlaneseq
  %v436 = vshrl.u32 %v435, 7
  %v437 = vsub.s32 3, %v436
  %v438 = vrot.slane %v177, %v437
  %v439 = vadd.f32 %v434, %v438
  %v440 = vmax.f32 %v439, 0.0
  %442 = vrot.lane.b32.xlu0 %v438, 31
  %v443 = vpop.permute.xlu0 %442
  %v445 = vadd.f32 %v176, %v443
  %v446 = vadd.f32 %v445, %v185
  %448 = vrot.lane.b32.xlu0 %v440, 32
  %v449 = vpop.permute.xlu0 %448
  %v451 = vadd.f32 %v446, %v449
  %v452 = vsub.f32 0.0, %v451
  %v453 = vmul.f32 %v452, 1.442695
  %v454 = vpow.pop %v453
  %v455 = vadd.f32 %v454, 1.0
  %v456 = vrcp.pop %v455
  %458 = vrot.lane.b32.xlu0 %v456, 96
  %v459 = vpop.permute.xlu0 %458
  %vm461 = vcmask 7168
  %462 = vst.msk [vmem:[%s5] sm:$0xff] %vm461, %v459
  // Predicated region
  $region22: #{fm_model_forward_pallas.1} parent=0 // pred_check
    _
  $region23: #{fm_model_forward_pallas.1} parent=0 // pred_check_branch
    %464 = sbr.rel (0) target = $region25
  $region24: #{fm_model_forward_pallas.1} parent=0 // pred_region
    _
  $region25: #{fm_model_forward_pallas.1} parent=0 // pred_fallthru
    _
  // Predicated region
  $region26: #{fm_model_forward_pallas.1} parent=0 // pred_check
    _
  $region27: #{fm_model_forward_pallas.1} parent=0 // pred_check_branch
    %466 = sbr.rel (0) target = $region29
  $region28: #{fm_model_forward_pallas.1} parent=0 // pred_region
    _
  $region29: #{fm_model_forward_pallas.1} parent=0 // pred_fallthru
    _

</llo_original>
